<compile_context>
chip_gen: v7x
topology: tpu7x:2x2x1
jax: 0.10.0
libtpu: 0.0.40
codegen_flags: <defaults>
</compile_context>

<pallas_src>
import jax
import jax.numpy as jnp
from jax.experimental import pallas as pl
from jax.experimental.pallas import tpu as pltpu

LANE = 128          # TPU lane width: pad feature-like dims to this
NEG_SLOPE = 0.2     # PyG GATConv default negative_slope
EPS = 1e-12         # torch.nn.functional.normalize default eps
NEG_BIG = -1e30     # finite "-inf" (avoids inf-inf NaNs in online softmax)


def _round_up(x, m):
    return ((x + m - 1) // m) * m


def _pad2(a, rows, cols):
    return jnp.pad(a, ((0, rows - a.shape[0]), (0, cols - a.shape[1])))


# ---------------------------------------------------------------------------
# Kernel 1: per-node linear transform + attention scores
#   hw = h @ W (stored bf16) ;  s_src = <hw, a_src> ;  s_dst = <hw, a_dst>
# ---------------------------------------------------------------------------
def _transform_kernel(h_ref, w_ref, asrc_ref, adst_ref,
                      hw_ref, ssrc_ref, sdst_ref):
    hw = jnp.dot(h_ref[...], w_ref[...], preferred_element_type=jnp.float32)
    hw_ref[...] = hw.astype(jnp.bfloat16)          # bf16 operand for p @ hw
    ssrc_ref[...] = jnp.sum(hw * asrc_ref[...], axis=1, keepdims=True)
    sdst_ref[...] = jnp.sum(hw * adst_ref[...], axis=1, keepdims=True)


def _node_transform(h, w, asrc_row, adst_row, tm):
    n_pad, din = h.shape
    h_pad = w.shape[1]
    return pl.pallas_call(
        _transform_kernel,
        out_shape=(
            jax.ShapeDtypeStruct((n_pad, h_pad), jnp.bfloat16),
            jax.ShapeDtypeStruct((n_pad, 1), jnp.float32),
            jax.ShapeDtypeStruct((n_pad, 1), jnp.float32),
        ),
        grid_spec=pltpu.PrefetchScalarGridSpec(
            num_scalar_prefetch=0,
            grid=(n_pad // tm,),
            in_specs=[
                pl.BlockSpec((tm, din), lambda i: (i, 0)),       # node tile
                pl.BlockSpec((din, h_pad), lambda i: (0, 0)),    # W (resident)
                pl.BlockSpec((1, h_pad), lambda i: (0, 0)),      # a_src
                pl.BlockSpec((1, h_pad), lambda i: (0, 0)),      # a_dst
            ],
            out_specs=[
                pl.BlockSpec((tm, h_pad), lambda i: (i, 0)),
                pl.BlockSpec((tm, 1), lambda i: (i, 0)),
                pl.BlockSpec((tm, 1), lambda i: (i, 0)),
            ],
        ),
        compiler_params=pltpu.CompilerParams(
            dimension_semantics=("parallel",)),
    )(h, w, asrc_row, adst_row)


# ---------------------------------------------------------------------------
# Kernel 2: GAT attention aggregation + L2-normalize + ReLU for one layer.
# Grid: (dst tiles [parallel], src tiles [arbitrary/reduction]).
# Online (flash-style) softmax over source tiles; int8 adjacency counts;
# bf16 p @ hw on the MXU; empty cnt tiles skipped via a prefetched bitmap.
# ---------------------------------------------------------------------------
def _gat_layer_kernel(bm_ref, cnt_ref, ssrc_ref, sdst_ref, hw_ref, b_ref,
                      out_ref, m_sc, l_sc, acc_sc):
    k = pl.program_id(1)
    ns = pl.num_programs(1)

    @pl.when(k == 0)
    def _():
        m_sc[...] = jnp.full_like(m_sc, NEG_BIG)
        l_sc[...] = jnp.zeros_like(l_sc)
        acc_sc[...] = jnp.zeros_like(acc_sc)

    @pl.when(bm_ref[pl.program_id(0) * ns + k] != 0)     # skip all-zero tiles
    def _():
        cnt = cnt_ref[...].astype(jnp.float32)            # [TM, TK] edge counts
        e = sdst_ref[...] + ssrc_ref[...]                  # [TM, TK] raw scores
        e = jnp.maximum(e, NEG_SLOPE * e)                  # LeakyReLU(0.2)
        e = jnp.where(cnt > 0.0, e, NEG_BIG)               # mask once, reuse
        m_new = jnp.maximum(m_sc[...], jnp.max(e, axis=1, keepdims=True))
        alpha = jnp.exp(m_sc[...] - m_new)                 # rescale old state
        p = jnp.exp(e - m_new) * cnt                       # softmax numerator
        l_sc[...] = alpha * l_sc[...] + jnp.sum(p, axis=1, keepdims=True)
        acc_sc[...] = alpha * acc_sc[...] + jnp.dot(
            p.astype(jnp.bfloat16), hw_ref[...],
            preferred_element_type=jnp.float32)
        m_sc[...] = m_new

    @pl.when(k == ns - 1)
    def _():
        denom = l_sc[...]
        inv = jnp.where(denom > 0.0,
                        pl.reciprocal(denom, approx=True), 0.0)
        h = acc_sc[...] * inv + b_ref[...]
        # F.normalize(p=2, dim=1): 1/max(||h||, eps) == rsqrt(max(||h||^2, eps^2))
        ss = jnp.sum(h * h, axis=1, keepdims=True)
        h = h * jax.lax.rsqrt(jnp.maximum(ss, EPS * EPS))
        out_ref[...] = jnp.maximum(h, 0.0)                 # ReLU


def _gat_aggregate(bitmap, cnt, ssrc_row, sdst, hw_bf16, b_row, tm, tk):
    n_pad = cnt.shape[0]
    h_pad = hw_bf16.shape[1]
    nd, ns = n_pad // tm, n_pad // tk
    cost = pl.CostEstimate(
        flops=2 * n_pad * n_pad * h_pad + 8 * n_pad * n_pad,
        transcendentals=n_pad * n_pad,
        bytes_accessed=n_pad * n_pad * 1 + n_pad * h_pad * (2 + 4) + n_pad * 8,
    )
    return pl.pallas_call(
        _gat_layer_kernel,
        out_shape=jax.ShapeDtypeStruct((n_pad, h_pad), jnp.float32),
        grid_spec=pltpu.PrefetchScalarGridSpec(
            num_scalar_prefetch=1,                          # nonzero-tile bitmap
            grid=(nd, ns),
            in_specs=[
                pl.BlockSpec((tm, tk), lambda i, k, bm: (i, k)),      # int8 cnt tile
                pl.BlockSpec((1, tk), lambda i, k, bm: (0, k)),       # s_src row tile
                pl.BlockSpec((tm, 1), lambda i, k, bm: (i, 0)),       # s_dst col tile
                pl.BlockSpec((tk, h_pad), lambda i, k, bm: (k, 0)),   # bf16 hw tile
                pl.BlockSpec((1, h_pad), lambda i, k, bm: (0, 0)),    # bias (resident)
            ],
            out_specs=pl.BlockSpec((tm, h_pad), lambda i, k, bm: (i, 0)),
            scratch_shapes=[
                pltpu.VMEM((tm, 1), jnp.float32),      # running max
                pltpu.VMEM((tm, 1), jnp.float32),      # running denom
                pltpu.VMEM((tm, h_pad), jnp.float32),  # running weighted sum
            ],
        ),
        # Per-step VMEM is bounded by the tile sizes (independent of N), well
        # under every generation's scoped default, so no vmem_limit override.
        compiler_params=pltpu.CompilerParams(
            dimension_semantics=("parallel", "arbitrary")),
        cost_estimate=cost,
    )(bitmap, cnt, ssrc_row, sdst, hw_bf16, b_row)


# ---------------------------------------------------------------------------
# Kernel 3: global mean pool (per-node weights 1/N) + final Linear.
# Reduction grid over node tiles; only the pooled (1, 3H) vector accumulates
# per step; the Linear matmul runs once in the finalize branch.
# ---------------------------------------------------------------------------
def _pool_linear_kernel(h1_ref, h2_ref, h3_ref, pw_ref,
                        wl1_ref, wl2_ref, wl3_ref, bl_ref,
                        out_ref, acc_ref):
    @pl.when(pl.program_id(0) == 0)
    def _():
        acc_ref[...] = jnp.zeros_like(acc_ref)

    pw = pw_ref[...]                                   # [TM, 1]: 1/N real nodes else 0
    hp = h1_ref.shape[1]
    acc_ref[:, 0:hp] += jnp.sum(h1_ref[...] * pw, axis=0, keepdims=True)
    acc_ref[:, hp:2 * hp] += jnp.sum(h2_ref[...] * pw, axis=0, keepdims=True)
    acc_ref[:, 2 * hp:3 * hp] += jnp.sum(h3_ref[...] * pw, axis=0, keepdims=True)

    @pl.when(pl.program_id(0) == pl.num_programs(0) - 1)
    def _():
        out_ref[...] = (
            jnp.dot(acc_ref[:, 0:hp], wl1_ref[...],
                    preferred_element_type=jnp.float32)
            + jnp.dot(acc_ref[:, hp:2 * hp], wl2_ref[...],
                      preferred_element_type=jnp.float32)
            + jnp.dot(acc_ref[:, 2 * hp:3 * hp], wl3_ref[...],
                      preferred_element_type=jnp.float32)
            + bl_ref[...])


def _pool_linear(h1, h2, h3, pw, wl1, wl2, wl3, bl_row, tm):
    n_pad, h_pad = h1.shape
    c_pad = bl_row.shape[1]
    return pl.pallas_call(
        _pool_linear_kernel,
        out_shape=jax.ShapeDtypeStruct((1, c_pad), jnp.float32),
        grid_spec=pltpu.PrefetchScalarGridSpec(
            num_scalar_prefetch=0,
            grid=(n_pad // tm,),
            in_specs=[
                pl.BlockSpec((tm, h_pad), lambda i: (i, 0)),
                pl.BlockSpec((tm, h_pad), lambda i: (i, 0)),
                pl.BlockSpec((tm, h_pad), lambda i: (i, 0)),
                pl.BlockSpec((tm, 1), lambda i: (i, 0)),
                pl.BlockSpec((h_pad, c_pad), lambda i: (0, 0)),
                pl.BlockSpec((h_pad, c_pad), lambda i: (0, 0)),
                pl.BlockSpec((h_pad, c_pad), lambda i: (0, 0)),
                pl.BlockSpec((1, c_pad), lambda i: (0, 0)),
            ],
            out_specs=pl.BlockSpec((1, c_pad), lambda i: (0, 0)),
            scratch_shapes=[pltpu.VMEM((1, 3 * h_pad), jnp.float32)],
        ),
        compiler_params=pltpu.CompilerParams(
            dimension_semantics=("arbitrary",)),    # reduction over node tiles
    )(h1, h2, h3, pw, wl1, wl2, wl3, bl_row)


# ---------------------------------------------------------------------------
# Glue
# ---------------------------------------------------------------------------
def build_edge_count_matrix(edge_index, num_nodes, n_pad):
    """Dense per-edge-count adjacency (GATConv self-loop handling) as int8."""
    src, dst = edge_index[0], edge_index[1]
    keep = (src != dst).astype(jnp.int32)            # remove existing self-loops
    cnt = jnp.zeros((n_pad, n_pad), jnp.int32).at[dst, src].add(keep)
    diag = (jnp.arange(n_pad) < num_nodes).astype(jnp.int32)
    cnt = cnt + jnp.diag(diag)                        # add one self-loop per real node
    # TODO(synk): int8 is exact for edge multiplicity <= 127; widen if a graph
    # exceeds that.
    return cnt.astype(jnp.int8)


def graph_gat_forward(x, edge_index, params):
    n, f = x.shape
    hidden = params["w1"].shape[1]
    num_classes = params["bl"].shape[0]

    # Fill the 2x256x256 MXU (v6e/v7x) once there are enough node rows to keep
    # several parallel dst tiles for megacore; 128 matches v5e's 4x128x128 MXU.
    tm = 256 if n >= 1024 else 128
    tk = tm
    n_pad = _round_up(max(n, tm), tm)
    f_pad = _round_up(f, LANE)
    h_pad = _round_up(hidden, LANE)
    c_pad = _round_up(num_classes, LANE)

    cnt = build_edge_count_matrix(edge_index, n, n_pad)
    nd, ns = n_pad // tm, n_pad // tk
    bitmap = jnp.any(cnt.reshape(nd, tm, ns, tk) != 0,
                     axis=(1, 3)).astype(jnp.int32).reshape(nd * ns)

    x_pad = _pad2(x.astype(jnp.float32), n_pad, f_pad)
    pool_w = jnp.where(jnp.arange(n_pad) < n, 1.0 / n, 0.0)
    pool_w = pool_w.astype(jnp.float32).reshape(n_pad, 1)

    dins = (f_pad, h_pad, h_pad)
    hs = []
    h = x_pad
    for l in range(3):
        w = _pad2(params[f"w{l + 1}"], dins[l], h_pad)
        asrc = _pad2(params[f"a_src{l + 1}"].reshape(1, -1), 1, h_pad)
        adst = _pad2(params[f"a_dst{l + 1}"].reshape(1, -1), 1, h_pad)
        b = _pad2(params[f"b{l + 1}"].reshape(1, -1), 1, h_pad)

        hw, ssrc, sdst = _node_transform(h, w, asrc, adst, tm)
        ssrc_row = ssrc.reshape(1, n_pad)   # O(N) relayout glue (column -> lane-dense row)
        h = _gat_aggregate(bitmap, cnt, ssrc_row, sdst, hw, b, tm, tk)
        hs.append(h)

    wl = params["wl"]
    wl1 = _pad2(wl[:hidden], h_pad, c_pad)
    wl2 = _pad2(wl[hidden:2 * hidden], h_pad, c_pad)
    wl3 = _pad2(wl[2 * hidden:], h_pad, c_pad)
    bl = _pad2(params["bl"].reshape(1, -1), 1, c_pad)

    out = _pool_linear(hs[0], hs[1], hs[2], pool_w, wl1, wl2, wl3, bl, tm)
    return out[:, :num_classes]


def graph_gat_reference(x, edge_index, params):
    """Pure-JAX f32 reference mirroring the PyTorch module's forward."""
    n = x.shape[0]
    src, dst = edge_index[0], edge_index[1]
    keep = (src != dst).astype(jnp.float32)
    cnt = (jnp.zeros((n, n), jnp.float32).at[dst, src].add(keep)
           + jnp.eye(n, dtype=jnp.float32))
    valid = cnt > 0.0

    def gat_layer(h, w, a_src, a_dst, b):
        hw = h @ w
        s_src = hw @ a_src.reshape(-1, 1)
        s_dst = hw @ a_dst.reshape(-1, 1)
        e = s_dst + s_src.T                             # [dst, src]
        e = jnp.where(e > 0.0, e, NEG_SLOPE * e)
        m = jnp.max(jnp.where(valid, e, NEG_BIG), axis=1, keepdims=True)
        p = jnp.exp(jnp.where(valid, e - m, NEG_BIG)) * cnt
        out = (p @ hw) / jnp.sum(p, axis=1, keepdims=True) + b
        nrm = jnp.sqrt(jnp.sum(out * out, axis=1, keepdims=True))
        out = out / jnp.maximum(nrm, EPS)
        return jnp.maximum(out, 0.0)

    h1 = gat_layer(x, params["w1"], params["a_src1"], params["a_dst1"], params["b1"])
    h2 = gat_layer(h1, params["w2"], params["a_src2"], params["a_dst2"], params["b2"])
    h3 = gat_layer(h2, params["w3"], params["a_src3"], params["a_dst3"], params["b3"])
    cat = jnp.concatenate([h1, h2, h3], axis=1)
    pooled = jnp.mean(cat, axis=0, keepdims=True)       # global_mean_pool(batch=None)
    return pooled @ params["wl"] + params["bl"].reshape(1, -1)


def init_params(key, num_features, num_classes, hidden=32):
    ks = jax.random.split(key, 14)

    def glorot(k, shape):
        lim = jnp.sqrt(6.0 / (shape[0] + shape[1]))
        return jax.random.uniform(k, shape, jnp.float32, -lim, lim)

    p = {}
    dins = (num_features, hidden, hidden)
    for l in range(3):
        p[f"w{l + 1}"] = glorot(ks[4 * l + 0], (dins[l], hidden))   # lin weight (stored transposed)
        p[f"a_src{l + 1}"] = glorot(ks[4 * l + 1], (1, hidden)).reshape(hidden)
        p[f"a_dst{l + 1}"] = glorot(ks[4 * l + 2], (1, hidden)).reshape(hidden)
        p[f"b{l + 1}"] = jnp.zeros((hidden,), jnp.float32)
    p["wl"] = glorot(ks[12], (3 * hidden, num_classes))             # torch Linear weight.T
    lim = 1.0 / jnp.sqrt(3.0 * hidden)
    p["bl"] = jax.random.uniform(ks[13], (num_classes,), jnp.float32, -lim, lim)
    return p


if __name__ == "__main__":
    key = jax.random.PRNGKey(0)
    k_x, k_e, k_p = jax.random.split(key, 3)

    num_nodes, num_features, num_classes, hidden = 200, 10, 4, 32
    num_edges = 600

    x = jax.random.normal(k_x, (num_nodes, num_features), jnp.float32)
    edge_index = jax.random.randint(k_e, (2, num_edges), 0, num_nodes,
                                    dtype=jnp.int32)
    params = init_params(k_p, num_features, num_classes, hidden)

    out = graph_gat_forward(x, edge_index, params)
    out = jax.block_until_ready(out)

    ref = graph_gat_reference(x, edge_index, params)
    assert out.shape == (1, num_classes), out.shape
    # bf16 p@hw aggregation: compare against the f32 reference with a tolerance
    # sized for bf16 rounding propagated through three normalized layers.
    assert jnp.allclose(out, ref, atol=5e-2, rtol=5e-2), (out, ref)

    print("KERNEL_OK")
</pallas_src>

<mosaic_0001>
module attributes {stable_mosaic.version = 11 : i64} {
  func.func @_transform_kernel(%arg0: i32, %arg1: memref<128x128xf32, #tpu.memory_space<vmem>>, %arg2: memref<128x128xf32, #tpu.memory_space<vmem>>, %arg3: memref<1x128xf32, #tpu.memory_space<vmem>>, %arg4: memref<1x128xf32, #tpu.memory_space<vmem>>, %arg5: memref<128x128xbf16, #tpu.memory_space<vmem>>, %arg6: memref<128x1xf32, #tpu.memory_space<vmem>>, %arg7: memref<128x1xf32, #tpu.memory_space<vmem>>) attributes {dimension_semantics = [#tpu.dimension_semantics<parallel>], iteration_bounds = array<i64: 2>, scalar_prefetch = 0 : i64, scratch_operands = 0 : i64, tpu.core_type = #tpu.core_type<tc>, window_params = [{transform_indices = @transform_0, window_bounds = array<i64: 128, 128>}, {pipeline_mode = #tpu.pipeline_mode<synchronous>, transform_indices = @transform_1, window_bounds = array<i64: 128, 128>}, {pipeline_mode = #tpu.pipeline_mode<synchronous>, transform_indices = @transform_2, window_bounds = array<i64: 1, 128>}, {pipeline_mode = #tpu.pipeline_mode<synchronous>, transform_indices = @transform_3, window_bounds = array<i64: 1, 128>}, {transform_indices = @transform_4, window_bounds = array<i64: 128, 128>}, {transform_indices = @transform_5, window_bounds = array<i64: 128, 1>}, {transform_indices = @transform_6, window_bounds = array<i64: 128, 1>}]} {
    %c0 = arith.constant 0 : index
    %c0_0 = arith.constant 0 : index
    %0 = vector.load %arg1[%c0, %c0_0] : memref<128x128xf32, #tpu.memory_space<vmem>>, vector<128x128xf32>
    %c0_1 = arith.constant 0 : index
    %c0_2 = arith.constant 0 : index
    %1 = vector.load %arg2[%c0_1, %c0_2] : memref<128x128xf32, #tpu.memory_space<vmem>>, vector<128x128xf32>
    %cst = arith.constant dense<0.000000e+00> : vector<128x128xf32>
    %2 = tpu.matmul %0, %1, %cst {dimension_numbers = #tpu.dot_dimension_numbers<[1], [0], [0], [1], [0, 0, 1, 1], [], []>} : vector<128x128xf32>, vector<128x128xf32>, vector<128x128xf32> -> vector<128x128xf32>
    %3 = arith.truncf %2 : vector<128x128xf32> to vector<128x128xbf16>
    %c0_3 = arith.constant 0 : index
    %c0_4 = arith.constant 0 : index
    %4 = vector.load %arg5[%c0_3, %c0_4] : memref<128x128xbf16, #tpu.memory_space<vmem>>, vector<128x128xbf16>
    tpu.vector_store %arg5[%c0_3, %c0_4], %3 {strides = array<i32>} : memref<128x128xbf16, #tpu.memory_space<vmem>>, vector<128x128xbf16>,
    %c0_5 = arith.constant 0 : index
    %c0_6 = arith.constant 0 : index
    %5 = vector.load %arg3[%c0_5, %c0_6] : memref<1x128xf32, #tpu.memory_space<vmem>>, vector<1x128xf32>
    %6 = vector.broadcast %5 : vector<1x128xf32> to vector<128x128xf32>
    %7 = arith.mulf %2, %6 : vector<128x128xf32>
    %cst_7 = arith.constant dense<0.000000e+00> : vector<128xf32>
    %8 = vector.multi_reduction <add>, %7, %cst_7 [1] : vector<128x128xf32> to vector<128xf32>
    %9 = vector.shape_cast %8 : vector<128xf32> to vector<128x1xf32>
    %c0_8 = arith.constant 0 : index
    %c0_9 = arith.constant 0 : index
    %10 = vector.load %arg6[%c0_8, %c0_9] : memref<128x1xf32, #tpu.memory_space<vmem>>, vector<128x1xf32>
    tpu.vector_store %arg6[%c0_8, %c0_9], %9 {strides = array<i32>} : memref<128x1xf32, #tpu.memory_space<vmem>>, vector<128x1xf32>,
    %c0_10 = arith.constant 0 : index
    %c0_11 = arith.constant 0 : index
    %11 = vector.load %arg4[%c0_10, %c0_11] : memref<1x128xf32, #tpu.memory_space<vmem>>, vector<1x128xf32>
    %12 = vector.broadcast %11 : vector<1x128xf32> to vector<128x128xf32>
    %13 = arith.mulf %2, %12 : vector<128x128xf32>
    %cst_12 = arith.constant dense<0.000000e+00> : vector<128xf32>
    %14 = vector.multi_reduction <add>, %13, %cst_12 [1] : vector<128x128xf32> to vector<128xf32>
    %15 = vector.shape_cast %14 : vector<128xf32> to vector<128x1xf32>
    %c0_13 = arith.constant 0 : index
    %c0_14 = arith.constant 0 : index
    %16 = vector.load %arg7[%c0_13, %c0_14] : memref<128x1xf32, #tpu.memory_space<vmem>>, vector<128x1xf32>
    tpu.vector_store %arg7[%c0_13, %c0_14], %15 {strides = array<i32>} : memref<128x1xf32, #tpu.memory_space<vmem>>, vector<128x1xf32>,
    return
  }
  func.func @transform_0(%arg0: i32) -> (i32, i32) {
    %c0_i32 = arith.constant 0 : i32
    %c0_i32_0 = arith.constant 0 : i32
    return %arg0, %c0_i32 : i32, i32
  }
  func.func @transform_1(%arg0: i32) -> (i32, i32) {
    %c0_i32 = arith.constant 0 : i32
    %c0_i32_0 = arith.constant 0 : i32
    %c0_i32_1 = arith.constant 0 : i32
    return %c0_i32, %c0_i32_0 : i32, i32
  }
  func.func @transform_2(%arg0: i32) -> (i32, i32) {
    %c0_i32 = arith.constant 0 : i32
    %c0_i32_0 = arith.constant 0 : i32
    %c0_i32_1 = arith.constant 0 : i32
    return %c0_i32, %c0_i32_0 : i32, i32
  }
  func.func @transform_3(%arg0: i32) -> (i32, i32) {
    %c0_i32 = arith.constant 0 : i32
    %c0_i32_0 = arith.constant 0 : i32
    %c0_i32_1 = arith.constant 0 : i32
    return %c0_i32, %c0_i32_0 : i32, i32
  }
  func.func @transform_4(%arg0: i32) -> (i32, i32) {
    %c0_i32 = arith.constant 0 : i32
    %c0_i32_0 = arith.constant 0 : i32
    return %arg0, %c0_i32 : i32, i32
  }
  func.func @transform_5(%arg0: i32) -> (i32, i32) {
    %c0_i32 = arith.constant 0 : i32
    %c0_i32_0 = arith.constant 0 : i32
    return %arg0, %c0_i32 : i32, i32
  }
  func.func @transform_6(%arg0: i32) -> (i32, i32) {
    %c0_i32 = arith.constant 0 : i32
    %c0_i32_0 = arith.constant 0 : i32
    return %arg0, %c0_i32 : i32, i32
  }
}

</mosaic_0001>

<llo_original>
// kernel: tpu_custom_call.1
$region0: #{tpu_custom_call.1}
  #allocation0 [shape = 'u32[]', space=smem, size = 0x4, offset = 0x4, fixed_abs, tag = 'smem constant byte address 0x4 - core index']
  #allocation1 [shape = 'u32[144,128]{1,0:T(1,128)}', space=vmem, size = 0x12000, scoped, tag = 'internal scratch']
  %s0 = inlined_call_operand.hbm [shape: f32[256,128], index: 0, kind: input, shape index: {}]
  %s1 = inlined_call_operand.hbm [shape: f32[128,128], index: 1, kind: input, shape index: {}]
  %s2 = inlined_call_operand.vmem [shape: f32[1,128], index: 2, kind: input, shape index: {}]
  %s3 = inlined_call_operand.vmem [shape: f32[1,128], index: 3, kind: input, shape index: {}]
  %s4 = inlined_call_operand.hbm [shape: bf16[256,128], index: 4, kind: output, shape index: {0}]
  %s5 = inlined_call_operand.vmem [shape: f32[256,1], index: 5, kind: output, shape index: {1}]
  %s6 = inlined_call_operand.vmem [shape: f32[256,1], index: 6, kind: output, shape index: {2}]
  %7 = xla_tuple %s4, %s5, %s6
  %s8 = sld [smem:[#allocation0]]
  $region73: #{tpu_custom_call.1} parent=0
    _
  %s10 = ssub.s32 1, %s8
  %s11 = scalar_select 0, %s10, %s8
  $region1: #{tpu_custom_call.1} parent=0
    #allocation2 [shape = 'u8[131072]{0}', space=vmem, size = 0x20000, scoped, tag = 'input window, operand 0']
    #allocation3 [shape = 's32[2]{0}', space=sflag, size = 0x8, scoped, tag = 'scoped memory for tpu_custom_call.1']
    #allocation4 [shape = 's32[2]{0}', space=sflag, size = 0x8, scoped, tag = 'scoped memory for tpu_custom_call.1']
    #allocation5 [shape = 'u8[65536]{0}', space=vmem, size = 0x10000, scoped, tag = 'input window, operand 1, single buffered']
    #allocation6 [shape = 's32[1]{0}', space=sflag, size = 0x4, scoped, tag = 'scoped memory for tpu_custom_call.1']
    #allocation7 [shape = 'u8[65536]{0}', space=vmem, size = 0x10000, scoped, tag = 'output window, operand 0']
    %12 = vsyncpa [#allocation3], 0
    %s13 = scalar_lea.sflag [#allocation3], 1
    %14 = vsyncpa %s13, 0
    %15 = vsyncpa [#allocation6], 0
    %16 = vsyncpa [#allocation4], 0
    %s17 = scalar_lea.sflag [#allocation4], 1
    %18 = vsyncpa %s17, 0
    loop: start=0, step=1, limit=4
    $region2: #{tpu_custom_call.1} parent=1 // loop_pre_header
      _
    $region3: #{tpu_custom_call.1} parent=1 // loop_header
      %s20 = sphi 0, %s24
      %p21 = scmp.ge.s32.totalorder %s20, 4
      %s30 = sphi 0, %s32
      %s33 = sphi 0, %s30
      %s34 = sphi 0, %s33
      %s50 = sphi 0, %s34
      %s54 = sphi 0, %s54
      %s56 = sphi 0, %s54
      %s57 = sphi 0, %s56
      %s71 = sphi 0, %s57
      %s75 = sphi 0, %s75
      %s77 = sphi 0, %s75
      %s78 = sphi 0, %s77
      %s92 = sphi 0, %s78
      %s96 = sphi 0, %s96
      %s98 = sphi 0, %s96
      %s99 = sphi 0, %s98
      %s113 = sphi 0, %s99
      %s119 = sphi 0, %s121
      %s122 = sphi 0, %s119
      %s123 = sphi 0, %s122
      %s139 = sphi 0, %s123
      %s145 = sphi 0, %s147
      %s148 = sphi 0, %s145
      %s149 = sphi 0, %s148
      %s165 = sphi 0, %s149
      %s171 = sphi 0, %s173
      %s174 = sphi 0, %s171
      %s175 = sphi 0, %s174
      %s191 = sphi 0, %s175
    $region4: #{tpu_custom_call.1} parent=1 // loop_header_branch
      %23 = sbr.rel (%p21) target = $region8
    $region5: #{tpu_custom_call.1} parent=1 // loop_body
      %s25 = ssub.s32 %s20, 1
      %s26 = ssub.s32 %s20, 2
      %s27 = sadd.s32 %s20, 1
      %s28 = ssub.s32 %s20, %s27
      %p29 = scmp.eq.s32.totalorder %s28, 0
      %s31 = sadd.s32 %s30, 1
      %s32 = scalar_select %p29, %s30, %s31
      %p35 = pneg %p29
      %p36 = scmp.eq.s32.totalorder %s20, 1
      %p37 = por %p35, %p36
      %p38 = scmp.ne.s32.totalorder %s30, %s33
      %p39 = scmp.eq.s32.totalorder %s20, 0
      %p40 = por %p38, %p39
      %p41 = scmp.ne.s32.totalorder %s30, %s33
      %p42 = scmp.eq.s32.totalorder %s25, 1
      %p43 = por %p41, %p42
      %p44 = scmp.ne.s32.totalorder %s33, %s34
      %p45 = scmp.eq.s32.totalorder %s25, 0
      %p46 = por %p44, %p45
      %p47 = scmp.ne.s32.totalorder %s33, %s34
      %p48 = scmp.eq.s32.totalorder %s26, 1
      %p49 = por %p47, %p48
      %p51 = scmp.ne.s32.totalorder %s34, %s50
      %p52 = scmp.eq.s32.totalorder %s26, 0
      %p53 = por %p51, %p52
      %s55 = sadd.s32 %s54, 1
      %p58 = scmp.eq.s32.totalorder %s20, 1
      %p59 = scmp.ne.s32.totalorder %s54, %s56
      %p60 = scmp.eq.s32.totalorder %s20, 0
      %p61 = por %p59, %p60
      %p62 = scmp.ne.s32.totalorder %s54, %s56
      %p63 = scmp.eq.s32.totalorder %s25, 1
      %p64 = por %p62, %p63
      %p65 = scmp.ne.s32.totalorder %s56, %s57
      %p66 = scmp.eq.s32.totalorder %s25, 0
      %p67 = por %p65, %p66
      %p68 = scmp.ne.s32.totalorder %s56, %s57
      %p69 = scmp.eq.s32.totalorder %s26, 1
      %p70 = por %p68, %p69
      %p72 = scmp.ne.s32.totalorder %s57, %s71
      %p73 = scmp.eq.s32.totalorder %s26, 0
      %p74 = por %p72, %p73
      %s76 = sadd.s32 %s75, 1
      %p79 = scmp.eq.s32.totalorder %s20, 1
      %p80 = scmp.ne.s32.totalorder %s75, %s77
      %p81 = scmp.eq.s32.totalorder %s20, 0
      %p82 = por %p80, %p81
      %p83 = scmp.ne.s32.totalorder %s75, %s77
      %p84 = scmp.eq.s32.totalorder %s25, 1
      %p85 = por %p83, %p84
      %p86 = scmp.ne.s32.totalorder %s77, %s78
      %p87 = scmp.eq.s32.totalorder %s25, 0
      %p88 = por %p86, %p87
      %p89 = scmp.ne.s32.totalorder %s77, %s78
      %p90 = scmp.eq.s32.totalorder %s26, 1
      %p91 = por %p89, %p90
      %p93 = scmp.ne.s32.totalorder %s78, %s92
      %p94 = scmp.eq.s32.totalorder %s26, 0
      %p95 = por %p93, %p94
      %s97 = sadd.s32 %s96, 1
      %p100 = scmp.eq.s32.totalorder %s20, 1
      %p101 = scmp.ne.s32.totalorder %s96, %s98
      %p102 = scmp.eq.s32.totalorder %s20, 0
      %p103 = por %p101, %p102
      %p104 = scmp.ne.s32.totalorder %s96, %s98
      %p105 = scmp.eq.s32.totalorder %s25, 1
      %p106 = por %p104, %p105
      %p107 = scmp.ne.s32.totalorder %s98, %s99
      %p108 = scmp.eq.s32.totalorder %s25, 0
      %p109 = por %p107, %p108
      %p110 = scmp.ne.s32.totalorder %s98, %s99
      %p111 = scmp.eq.s32.totalorder %s26, 1
      %p112 = por %p110, %p111
      %p114 = scmp.ne.s32.totalorder %s99, %s113
      %p115 = scmp.eq.s32.totalorder %s26, 0
      %p116 = por %p114, %p115
      %s117 = ssub.s32 %s20, %s27
      %p118 = scmp.eq.s32.totalorder %s117, 0
      %s120 = sadd.s32 %s119, 1
      %s121 = scalar_select %p118, %s119, %s120
      %p124 = pneg %p118
      %p125 = scmp.eq.s32.totalorder %s20, 1
      %p126 = por %p124, %p125
      %p127 = scmp.ne.s32.totalorder %s119, %s122
      %p128 = scmp.eq.s32.totalorder %s20, 0
      %p129 = por %p127, %p128
      %p130 = scmp.ne.s32.totalorder %s119, %s122
      %p131 = scmp.eq.s32.totalorder %s25, 1
      %p132 = por %p130, %p131
      %p133 = scmp.ne.s32.totalorder %s122, %s123
      %p134 = scmp.eq.s32.totalorder %s25, 0
      %p135 = por %p133, %p134
      %p136 = scmp.ne.s32.totalorder %s122, %s123
      %p137 = scmp.eq.s32.totalorder %s26, 1
      %p138 = por %p136, %p137
      %p140 = scmp.ne.s32.totalorder %s123, %s139
      %p141 = scmp.eq.s32.totalorder %s26, 0
      %p142 = por %p140, %p141
      %s143 = ssub.s32 %s20, %s27
      %p144 = scmp.eq.s32.totalorder %s143, 0
      %s146 = sadd.s32 %s145, 1
      %s147 = scalar_select %p144, %s145, %s146
      %p150 = pneg %p144
      %p151 = scmp.eq.s32.totalorder %s20, 1
      %p152 = por %p150, %p151
      %p153 = scmp.ne.s32.totalorder %s145, %s148
      %p154 = scmp.eq.s32.totalorder %s20, 0
      %p155 = por %p153, %p154
      %p156 = scmp.ne.s32.totalorder %s145, %s148
      %p157 = scmp.eq.s32.totalorder %s25, 1
      %p158 = por %p156, %p157
      %p159 = scmp.ne.s32.totalorder %s148, %s149
      %p160 = scmp.eq.s32.totalorder %s25, 0
      %p161 = por %p159, %p160
      %p162 = scmp.ne.s32.totalorder %s148, %s149
      %p163 = scmp.eq.s32.totalorder %s26, 1
      %p164 = por %p162, %p163
      %p166 = scmp.ne.s32.totalorder %s149, %s165
      %p167 = scmp.eq.s32.totalorder %s26, 0
      %p168 = por %p166, %p167
      %s169 = ssub.s32 %s20, %s27
      %p170 = scmp.eq.s32.totalorder %s169, 0
      %s172 = sadd.s32 %s171, 1
      %s173 = scalar_select %p170, %s171, %s172
      %p176 = pneg %p170
      %p177 = scmp.eq.s32.totalorder %s20, 1
      %p178 = por %p176, %p177
      %p179 = scmp.ne.s32.totalorder %s171, %s174
      %p180 = scmp.eq.s32.totalorder %s20, 0
      %p181 = por %p179, %p180
      %p182 = scmp.ne.s32.totalorder %s171, %s174
      %p183 = scmp.eq.s32.totalorder %s25, 1
      %p184 = por %p182, %p183
      %p185 = scmp.ne.s32.totalorder %s174, %s175
      %p186 = scmp.eq.s32.totalorder %s25, 0
      %p187 = por %p185, %p186
      %p188 = scmp.ne.s32.totalorder %s174, %s175
      %p189 = scmp.eq.s32.totalorder %s26, 1
      %p190 = por %p188, %p189
      %p192 = scmp.ne.s32.totalorder %s175, %s191
      %p193 = scmp.eq.s32.totalorder %s26, 0
      %p194 = por %p192, %p193
      %p195 = scmp.le.s32.totalorder 1, %s20
      %p196 = scmp.lt.s32.totalorder %s20, 3
      %p197 = pnand %p195, %p196
      %p198 = pneg %p197
      // Predicated region
      $region9: #{tpu_custom_call.1} parent=5 // pred_check
        _
      $region10: #{tpu_custom_call.1} parent=5 // pred_check_branch
        %200 = sbr.rel (%p197) target = $region12
      $region11: #{tpu_custom_call.1} parent=5 // pred_region
        %s201 = ssub.s32 %s20, 1
        // Predicated region
        $region13: #{tpu_custom_call.1} parent=11 // pred_check
          %p202 = pneg %p67
        $region14: #{tpu_custom_call.1} parent=11 // pred_check_branch
          %204 = sbr.rel (%p202) target = $region16
        $region15: #{tpu_custom_call.1} parent=11 // pred_region
          %s206 = ssub.s32 2048, 2048
          %207 = vsyncadd [#allocation6], %s206
          %s208 = sshll.u32 [#allocation5], 4
          %s209 = int_to_ptr.vmem [resolvable:$true] %s208
          %214 = dma.hbm_to_vmem [thread:$0]  %s1, 2048, %s209, [#allocation6], 128, 128, 8
        $region16: #{tpu_custom_call.1} parent=11 // pred_fallthru
          _
        // Predicated region
        $region17: #{tpu_custom_call.1} parent=11 // pred_check
          %p215 = pneg %p88
        $region18: #{tpu_custom_call.1} parent=11 // pred_check_branch
          %217 = sbr.rel (%p215) target = $region20
        $region19: #{tpu_custom_call.1} parent=11 // pred_region
          _
        $region20: #{tpu_custom_call.1} parent=11 // pred_fallthru
          _
        // Predicated region
        $region21: #{tpu_custom_call.1} parent=11 // pred_check
          %p218 = pneg %p109
        $region22: #{tpu_custom_call.1} parent=11 // pred_check_branch
          %220 = sbr.rel (%p218) target = $region24
        $region23: #{tpu_custom_call.1} parent=11 // pred_region
          _
        $region24: #{tpu_custom_call.1} parent=11 // pred_fallthru
          _
      $region12: #{tpu_custom_call.1} parent=5 // pred_fallthru
        _
      %p221 = scmp.lt.s32.totalorder %s20, 2
      // Predicated region
      $region25: #{tpu_custom_call.1} parent=5 // pred_check
        %p222 = pneg %p221
      $region26: #{tpu_custom_call.1} parent=5 // pred_check_branch
        %224 = sbr.rel (%p222) target = $region28
      $region27: #{tpu_custom_call.1} parent=5 // pred_region
        // Predicated region
        $region29: #{tpu_custom_call.1} parent=27 // pred_check
          %p225 = pneg %p40
        $region30: #{tpu_custom_call.1} parent=27 // pred_check_branch
          %227 = sbr.rel (%p225) target = $region32
        $region31: #{tpu_custom_call.1} parent=27 // pred_region
          %s228 = sand.u32 %s30, 1
          %s229 = scalar_lea.sflag [#allocation3], %s228
          %s230 = sand.u32 %s30, 1
          %s231 = smul.addr %s230, 128
          %s232 = scalar_lea.vmem [#allocation2], %s231
          %s233 = smul.u32 16, %s20
          %s235 = ssub.s32 2048, 2048
          %236 = vsyncadd %s229, %s235
          %s237 = smul.addr %s233, 128
          %s238 = scalar_lea.hbm %s0, %s237
          %s239 = sshll.u32 %s232, 4
          %s240 = int_to_ptr.vmem [resolvable:$true] %s239
          %245 = dma.hbm_to_vmem [thread:$0]  %s238, 2048, %s240, %s229, 128, 128, 8
        $region32: #{tpu_custom_call.1} parent=27 // pred_fallthru
          _
      $region28: #{tpu_custom_call.1} parent=5 // pred_fallthru
        _
      %p246 = scmp.le.s32.totalorder 1, %s20
      %p247 = scmp.lt.s32.totalorder %s20, 3
      %p248 = pnand %p246, %p247
      %p249 = pneg %p248
      // Predicated region
      $region33: #{tpu_custom_call.1} parent=5 // pred_check
        _
      $region34: #{tpu_custom_call.1} parent=5 // pred_check_branch
        %251 = sbr.rel (%p248) target = $region36
      $region35: #{tpu_custom_call.1} parent=5 // pred_region
        %s252 = ssub.s32 %s20, 1
        %s253 = sand.u32 %s33, 1
        %s254 = scalar_lea.sflag [#allocation3], %s253
        %s255 = sand.u32 %s33, 1
        %s256 = smul.addr %s255, 128
        %s257 = scalar_lea.vmem [#allocation2], %s256
        // Predicated region
        $region37: #{tpu_custom_call.1} parent=35 // pred_check
          %p258 = pneg %p46
        $region38: #{tpu_custom_call.1} parent=35 // pred_check_branch
          %260 = sbr.rel (%p258) target = $region40
        $region39: #{tpu_custom_call.1} parent=35 // pred_region
          %261 = dma.done %s254, 2048
        $region40: #{tpu_custom_call.1} parent=35 // pred_fallthru
          _
        // Predicated region
        $region41: #{tpu_custom_call.1} parent=35 // pred_check
          %p262 = pneg %p67
        $region42: #{tpu_custom_call.1} parent=35 // pred_check_branch
          %264 = sbr.rel (%p262) target = $region44
        $region43: #{tpu_custom_call.1} parent=35 // pred_region
          %265 = dma.done [#allocation6], 2048
        $region44: #{tpu_custom_call.1} parent=35 // pred_fallthru
          _
        %s266 = sand.u32 %s33, 1
        %s267 = scalar_lea.sflag [#allocation3], %s266
        %s268 = sand.u32 %s33, 1
        %s269 = smul.addr %s268, 128
        %s270 = scalar_lea.vmem [#allocation2], %s269
        %p271 = pneg %p46
        %p272 = pneg %p43
        %p273 = pneg %p67
        %p274 = pneg %p64
        %p275 = pneg %p88
        %p276 = pneg %p85
        %p277 = pneg %p109
        %p278 = pneg %p106
        %p279 = pneg %p135
        %p280 = pneg %p132
        %s281 = sand.u32 %s122, 1
        %s282 = scalar_lea.sflag [#allocation4], %s281
        %s283 = sand.u32 %s122, 1
        %s284 = smul.addr %s283, 64
        %s285 = scalar_lea.vmem [#allocation7], %s284
        %p286 = pneg %p161
        %p287 = pneg %p158
        %s288 = smul.u32 16, %s25
        %p289 = scmp.lt.s32.totalorder %s288, 31
        %s290 = scalar_select %p289, %s288, 31
        %s291 = smul.addr %s290, 8
        %s292 = scalar_lea.vmem %s5, %s291
        %p293 = pneg %p187
        %p294 = pneg %p184
        %s295 = smul.u32 16, %s25
        %p296 = scmp.lt.s32.totalorder %s295, 31
        %s297 = scalar_select %p296, %s295, 31
        %s298 = smul.addr %s297, 8
        %s299 = scalar_lea.vmem %s6, %s298
        %s300 = smul.u32 16, %s25
        %s301 = smul.u32 16, %s25
        %s302 = smul.u32 16, %s25
        %p303 = scmp.lt.s32.totalorder %s302, 31
        %s304 = scalar_select %p303, %s302, 31
        %s305 = smul.addr %s304, 8
        %s306 = scalar_lea.vmem %s5, %s305
        %s307 = smul.u32 16, %s25
        %s308 = smul.u32 16, %s25
        %p309 = scmp.lt.s32.totalorder %s308, 31
        %s310 = scalar_select %p309, %s308, 31
        %s311 = smul.addr %s310, 8
        %s312 = scalar_lea.vmem %s6, %s311
        %s313 = smul.u32 16, %s25
        %v314 = vld [vmem:[%s257] sm:$0xff]
        %v315 = vld [vmem:[%s257 + $0x8] sm:$0xff]
        %v316 = vld [vmem:[%s257 + $0x10] sm:$0xff]
        %v317 = vld [vmem:[%s257 + $0x18] sm:$0xff]
        %v318 = vld [vmem:[%s257 + $0x20] sm:$0xff]
        %v319 = vld [vmem:[%s257 + $0x28] sm:$0xff]
        %v320 = vld [vmem:[%s257 + $0x30] sm:$0xff]
        %v321 = vld [vmem:[%s257 + $0x38] sm:$0xff]
        %v322 = vld [vmem:[%s257 + $0x40] sm:$0xff]
        %v323 = vld [vmem:[%s257 + $0x48] sm:$0xff]
        %v324 = vld [vmem:[%s257 + $0x50] sm:$0xff]
        %v325 = vld [vmem:[%s257 + $0x58] sm:$0xff]
        %v326 = vld [vmem:[%s257 + $0x60] sm:$0xff]
        %v327 = vld [vmem:[%s257 + $0x68] sm:$0xff]
        %v328 = vld [vmem:[%s257 + $0x70] sm:$0xff]
        %v329 = vld [vmem:[%s257 + $0x78] sm:$0xff]
        %v330 = vld [vmem:[#allocation5] sm:$0xff]
        %v331 = vld [vmem:[#allocation5 + $0x8] sm:$0xff]
        %v332 = vld [vmem:[#allocation5 + $0x10] sm:$0xff]
        %v333 = vld [vmem:[#allocation5 + $0x18] sm:$0xff]
        %v334 = vld [vmem:[#allocation5 + $0x20] sm:$0xff]
        %v335 = vld [vmem:[#allocation5 + $0x28] sm:$0xff]
        %v336 = vld [vmem:[#allocation5 + $0x30] sm:$0xff]
        %v337 = vld [vmem:[#allocation5 + $0x38] sm:$0xff]
        %v338 = vld [vmem:[#allocation5 + $0x40] sm:$0xff]
        %v339 = vld [vmem:[#allocation5 + $0x48] sm:$0xff]
        %v340 = vld [vmem:[#allocation5 + $0x50] sm:$0xff]
        %v341 = vld [vmem:[#allocation5 + $0x58] sm:$0xff]
        %v342 = vld [vmem:[#allocation5 + $0x60] sm:$0xff]
        %v343 = vld [vmem:[#allocation5 + $0x68] sm:$0xff]
        %v344 = vld [vmem:[#allocation5 + $0x70] sm:$0xff]
        %v345 = vld [vmem:[#allocation5 + $0x78] sm:$0xff]
        %346 = vmatprep.subr.mxu0 0.0
        %347 = vmatpush1.msra.mxu0 %v330
        %348 = vmatprep.subr.mxu0 0.0
        %349 = vmatpush1.msra.mxu0 %v331
        %350 = vmatprep.subr.mxu0 0.0
        %351 = vmatpush1.msra.mxu0 %v332
        %352 = vmatprep.subr.mxu0 0.0
        %353 = vmatpush1.msra.mxu0 %v333
        %354 = vmatprep.subr.mxu0 0.0
        %355 = vmatpush1.msra.mxu0 %v334
        %356 = vmatprep.subr.mxu0 0.0
        %357 = vmatpush1.msra.mxu0 %v335
        %358 = vmatprep.subr.mxu0 0.0
        %359 = vmatpush1.msra.mxu0 %v336
        %360 = vmatprep.subr.mxu0 0.0
        %361 = vmatpush1.msra.mxu0 %v337
        %362 = vmatprep.subr.mxu0 0.0
        %363 = vmatpush1.msra.mxu0 %v338
        %364 = vmatprep.subr.mxu0 0.0
        %365 = vmatpush1.msra.mxu0 %v339
        %366 = vmatprep.subr.mxu0 0.0
        %367 = vmatpush1.msra.mxu0 %v340
        %368 = vmatprep.subr.mxu0 0.0
        %369 = vmatpush1.msra.mxu0 %v341
        %370 = vmatprep.subr.mxu0 0.0
        %371 = vmatpush1.msra.mxu0 %v342
        %372 = vmatprep.subr.mxu0 0.0
        %373 = vmatpush1.msra.mxu0 %v343
        %374 = vmatprep.subr.mxu0 0.0
        %375 = vmatpush1.msra.mxu0 %v344
        %376 = vmatprep.subr.mxu0 0.0
        %377 = vmatpush1.msra.mxu0 %v345
        %378 = vmatprep.subr.mxu0 0.0
        %379 = vmatpush1.msra.mxu0 0.0
        %380 = vmatprep.subr.mxu0 0.0
        %381 = vmatpush1.msra.mxu0 0.0
        %382 = vmatprep.subr.mxu0 0.0
        %383 = vmatpush1.msra.mxu0 0.0
        %384 = vmatprep.subr.mxu0 0.0
        %385 = vmatpush1.msra.mxu0 0.0
        %386 = vmatprep.subr.mxu0 0.0
        %387 = vmatpush1.msra.mxu0 0.0
        %388 = vmatprep.subr.mxu0 0.0
        %389 = vmatpush1.msra.mxu0 0.0
        %390 = vmatprep.subr.mxu0 0.0
        %391 = vmatpush1.msra.mxu0 0.0
        %392 = vmatprep.subr.mxu0 0.0
        %393 = vmatpush1.msra.mxu0 0.0
        %394 = vmatprep.subr.mxu0 0.0
        %395 = vmatpush1.msra.mxu0 0.0
        %396 = vmatprep.subr.mxu0 0.0
        %397 = vmatpush1.msra.mxu0 0.0
        %398 = vmatprep.subr.mxu0 0.0
        %399 = vmatpush1.msra.mxu0 0.0
        %400 = vmatprep.subr.mxu0 0.0
        %401 = vmatpush1.msra.mxu0 0.0
        %402 = vmatprep.subr.mxu0 0.0
        %403 = vmatpush1.msra.mxu0 0.0
        %404 = vmatprep.subr.mxu0 0.0
        %405 = vmatpush1.msra.mxu0 0.0
        %406 = vmatprep.subr.mxu0 0.0
        %407 = vmatpush1.msra.mxu0 0.0
        %408 = vmatprep.subr.mxu0 0.0
        %409 = vmatpush1.msra.mxu0 0.0
        %410 = vmatprep.mubr.f32.mxu0 0.0
        %411 = vmatmul.mubr.f32.gmra.mrb[0].mxu0 %v314
        %v412 = vpop.f32.mrb[0].mxu0
        %v413 = vadd.f32 0.0, %v412
        %v414 = vpop.f32.mrb[0].mxu0
        %415 = vmatprep.mubr.f32.mxu0 0.0
        %416 = vmatmul.mubr.f32.gmra.mrb[0].mxu0 %v315
        %v417 = vpop.f32.mrb[0].mxu0
        %v418 = vadd.f32 0.0, %v417
        %v419 = vpop.f32.mrb[0].mxu0
        %420 = vmatprep.mubr.f32.mxu0 0.0
        %421 = vmatmul.mubr.f32.gmra.mrb[0].mxu0 %v316
        %v422 = vpop.f32.mrb[0].mxu0
        %v423 = vadd.f32 0.0, %v422
        %v424 = vpop.f32.mrb[0].mxu0
        %425 = vmatprep.mubr.f32.mxu0 0.0
        %426 = vmatmul.mubr.f32.gmra.mrb[0].mxu0 %v317
        %v427 = vpop.f32.mrb[0].mxu0
        %v428 = vadd.f32 0.0, %v427
        %v429 = vpop.f32.mrb[0].mxu0
        %430 = vmatprep.mubr.f32.mxu0 0.0
        %431 = vmatmul.mubr.f32.gmra.mrb[0].mxu0 %v318
        %v432 = vpop.f32.mrb[0].mxu0
        %v433 = vadd.f32 0.0, %v432
        %v434 = vpop.f32.mrb[0].mxu0
        %435 = vmatprep.mubr.f32.mxu0 0.0
        %436 = vmatmul.mubr.f32.gmra.mrb[0].mxu0 %v319
        %v437 = vpop.f32.mrb[0].mxu0
        %v438 = vadd.f32 0.0, %v437
        %v439 = vpop.f32.mrb[0].mxu0
        %440 = vmatprep.mubr.f32.mxu0 0.0
        %441 = vmatmul.mubr.f32.gmra.mrb[0].mxu0 %v320
        %v442 = vpop.f32.mrb[0].mxu0
        %v443 = vadd.f32 0.0, %v442
        %v444 = vpop.f32.mrb[0].mxu0
        %445 = vmatprep.mubr.f32.mxu0 0.0
        %446 = vmatmul.mubr.f32.gmra.mrb[0].mxu0 %v321
        %v447 = vpop.f32.mrb[0].mxu0
        %v448 = vadd.f32 0.0, %v447
        %v449 = vpop.f32.mrb[0].mxu0
        %450 = vmatprep.mubr.f32.mxu0 0.0
        %451 = vmatmul.mubr.f32.gmra.mrb[0].mxu0 %v322
        %v452 = vpop.f32.mrb[0].mxu0
        %v453 = vadd.f32 0.0, %v452
        %v454 = vpop.f32.mrb[0].mxu0
        %455 = vmatprep.mubr.f32.mxu0 0.0
        %456 = vmatmul.mubr.f32.gmra.mrb[0].mxu0 %v323
        %v457 = vpop.f32.mrb[0].mxu0
        %v458 = vadd.f32 0.0, %v457
        %v459 = vpop.f32.mrb[0].mxu0
        %460 = vmatprep.mubr.f32.mxu0 0.0
        %461 = vmatmul.mubr.f32.gmra.mrb[0].mxu0 %v324
        %v462 = vpop.f32.mrb[0].mxu0
        %v463 = vadd.f32 0.0, %v462
        %v464 = vpop.f32.mrb[0].mxu0
        %465 = vmatprep.mubr.f32.mxu0 0.0
        %466 = vmatmul.mubr.f32.gmra.mrb[0].mxu0 %v325
        %v467 = vpop.f32.mrb[0].mxu0
        %v468 = vadd.f32 0.0, %v467
        %v469 = vpop.f32.mrb[0].mxu0
        %470 = vmatprep.mubr.f32.mxu0 0.0
        %471 = vmatmul.mubr.f32.gmra.mrb[0].mxu0 %v326
        %v472 = vpop.f32.mrb[0].mxu0
        %v473 = vadd.f32 0.0, %v472
        %v474 = vpop.f32.mrb[0].mxu0
        %475 = vmatprep.mubr.f32.mxu0 0.0
        %476 = vmatmul.mubr.f32.gmra.mrb[0].mxu0 %v327
        %v477 = vpop.f32.mrb[0].mxu0
        %v478 = vadd.f32 0.0, %v477
        %v479 = vpop.f32.mrb[0].mxu0
        %480 = vmatprep.mubr.f32.mxu0 0.0
        %481 = vmatmul.mubr.f32.gmra.mrb[0].mxu0 %v328
        %v482 = vpop.f32.mrb[0].mxu0
        %v483 = vadd.f32 0.0, %v482
        %v484 = vpop.f32.mrb[0].mxu0
        %485 = vmatprep.mubr.f32.mxu0 0.0
        %486 = vmatmul.mubr.f32.gmra.mrb[0].mxu0 %v329
        %v487 = vpop.f32.mrb[0].mxu0
        %v488 = vadd.f32 0.0, %v487
        %v489 = vpop.f32.mrb[0].mxu0
        %490 = vdwg.mxu0
        %v491 = vpack.c.bf16 %v418, %v413
        %v492 = vpack.c.bf16 %v428, %v423
        %v493 = vpack.c.bf16 %v438, %v433
        %v494 = vpack.c.bf16 %v448, %v443
        %v495 = vpack.c.bf16 %v458, %v453
        %v496 = vpack.c.bf16 %v468, %v463
        %v497 = vpack.c.bf16 %v478, %v473
        %v498 = vpack.c.bf16 %v488, %v483
        %v507 = vunpack.c.l.b16 %v491
        %v508 = vunpack.c.h.b16 %v491
        %v509 = vunpack.c.l.b16 %v492
        %v510 = vunpack.c.h.b16 %v492
        %v511 = vunpack.c.l.b16 %v493
        %v512 = vunpack.c.h.b16 %v493
        %v513 = vunpack.c.l.b16 %v494
        %v514 = vunpack.c.h.b16 %v494
        %v515 = vunpack.c.l.b16 %v495
        %v516 = vunpack.c.h.b16 %v495
        %v517 = vunpack.c.l.b16 %v496
        %v518 = vunpack.c.h.b16 %v496
        %v519 = vunpack.c.l.b16 %v497
        %v520 = vunpack.c.h.b16 %v497
        %v521 = vunpack.c.l.b16 %v498
        %v522 = vunpack.c.h.b16 %v498
        %v523 = vpack.c.b16 %v507, %v507
        %v524 = vpack.c.b16 %v508, %v508
        %v525 = vpack.c.b16 %v509, %v509
        %v526 = vpack.c.b16 %v510, %v510
        %v527 = vpack.c.b16 %v511, %v511
        %v528 = vpack.c.b16 %v512, %v512
        %v529 = vpack.c.b16 %v513, %v513
        %v530 = vpack.c.b16 %v514, %v514
        %v531 = vpack.c.b16 %v515, %v515
        %v532 = vpack.c.b16 %v516, %v516
        %v533 = vpack.c.b16 %v517, %v517
        %v534 = vpack.c.b16 %v518, %v518
        %v535 = vpack.c.b16 %v519, %v519
        %v536 = vpack.c.b16 %v520, %v520
        %v537 = vpack.c.b16 %v521, %v521
        %v538 = vpack.c.b16 %v522, %v522
        %555 = vst [vmem:[%s285] sm:$0xf] %v523
        %556 = vst [vmem:[%s285 + $0x4] sm:$0xf] %v524
        %557 = vst [vmem:[%s285 + $0x8] sm:$0xf] %v525
        %558 = vst [vmem:[%s285 + $0xc] sm:$0xf] %v526
        %559 = vst [vmem:[%s285 + $0x10] sm:$0xf] %v527
        %560 = vst [vmem:[%s285 + $0x14] sm:$0xf] %v528
        %561 = vst [vmem:[%s285 + $0x18] sm:$0xf] %v529
        %562 = vst [vmem:[%s285 + $0x1c] sm:$0xf] %v530
        %563 = vst [vmem:[%s285 + $0x20] sm:$0xf] %v531
        %564 = vst [vmem:[%s285 + $0x24] sm:$0xf] %v532
        %565 = vst [vmem:[%s285 + $0x28] sm:$0xf] %v533
        %566 = vst [vmem:[%s285 + $0x2c] sm:$0xf] %v534
        %567 = vst [vmem:[%s285 + $0x30] sm:$0xf] %v535
        %568 = vst [vmem:[%s285 + $0x34] sm:$0xf] %v536
        %569 = vst [vmem:[%s285 + $0x38] sm:$0xf] %v537
        %570 = vst [vmem:[%s285 + $0x3c] sm:$0xf] %v538
        %v571 = vld [vmem:[%s2] sm:$0x1]
        %v573 = vlaneseq
        %v574 = vshrl.u32 %v573, 7
        %v575 = vsub.s32 0, %v574
        %v576 = vrot.slane %v571, %v575
        %v578 = vmul.f32 %v413, %v576
        %v579 = vmul.f32 %v418, %v576
        %v580 = vmul.f32 %v423, %v576
        %v581 = vmul.f32 %v428, %v576
        %v582 = vmul.f32 %v433, %v576
        %v583 = vmul.f32 %v438, %v576
        %v584 = vmul.f32 %v443, %v576
        %v585 = vmul.f32 %v448, %v576
        %v586 = vmul.f32 %v453, %v576
        %v587 = vmul.f32 %v458, %v576
        %v588 = vmul.f32 %v463, %v576
        %v589 = vmul.f32 %v468, %v576
        %v590 = vmul.f32 %v473, %v576
        %v591 = vmul.f32 %v478, %v576
        %v592 = vmul.f32 %v483, %v576
        %v593 = vmul.f32 %v488, %v576
        %594 = vadd.xlane.f32.xlu0 %v578
        %v595 = vpop.xlane.xlu0 %594
        %596 = vadd.xlane.f32.xlu0 %v579
        %v597 = vpop.xlane.xlu0 %596
        %598 = vadd.xlane.f32.xlu0 %v580
        %v599 = vpop.xlane.xlu0 %598
        %600 = vadd.xlane.f32.xlu0 %v581
        %v601 = vpop.xlane.xlu0 %600
        %602 = vadd.xlane.f32.xlu0 %v582
        %v603 = vpop.xlane.xlu0 %602
        %604 = vadd.xlane.f32.xlu0 %v583
        %v605 = vpop.xlane.xlu0 %604
        %606 = vadd.xlane.f32.xlu0 %v584
        %v607 = vpop.xlane.xlu0 %606
        %608 = vadd.xlane.f32.xlu0 %v585
        %v609 = vpop.xlane.xlu0 %608
        %610 = vadd.xlane.f32.xlu0 %v586
        %v611 = vpop.xlane.xlu0 %610
        %612 = vadd.xlane.f32.xlu0 %v587
        %v613 = vpop.xlane.xlu0 %612
        %614 = vadd.xlane.f32.xlu0 %v588
        %v615 = vpop.xlane.xlu0 %614
        %616 = vadd.xlane.f32.xlu0 %v589
        %v617 = vpop.xlane.xlu0 %616
        %618 = vadd.xlane.f32.xlu0 %v590
        %v619 = vpop.xlane.xlu0 %618
        %620 = vadd.xlane.f32.xlu0 %v591
        %v621 = vpop.xlane.xlu0 %620
        %622 = vadd.xlane.f32.xlu0 %v592
        %v623 = vpop.xlane.xlu0 %622
        %624 = vadd.xlane.f32.xlu0 %v593
        %v625 = vpop.xlane.xlu0 %624
        %vm626 = vcmask 7168
        %627 = vst.msk [vmem:[%s306] sm:$0xff] %vm626, %v595
        %628 = vst.msk [vmem:[%s306 + $0x8] sm:$0xff] %vm626, %v597
        %629 = vst.msk [vmem:[%s306 + $0x10] sm:$0xff] %vm626, %v599
        %630 = vst.msk [vmem:[%s306 + $0x18] sm:$0xff] %vm626, %v601
        %631 = vst.msk [vmem:[%s306 + $0x20] sm:$0xff] %vm626, %v603
        %632 = vst.msk [vmem:[%s306 + $0x28] sm:$0xff] %vm626, %v605
        %633 = vst.msk [vmem:[%s306 + $0x30] sm:$0xff] %vm626, %v607
        %634 = vst.msk [vmem:[%s306 + $0x38] sm:$0xff] %vm626, %v609
        %635 = vst.msk [vmem:[%s306 + $0x40] sm:$0xff] %vm626, %v611
        %636 = vst.msk [vmem:[%s306 + $0x48] sm:$0xff] %vm626, %v613
        %637 = vst.msk [vmem:[%s306 + $0x50] sm:$0xff] %vm626, %v615
        %638 = vst.msk [vmem:[%s306 + $0x58] sm:$0xff] %vm626, %v617
        %639 = vst.msk [vmem:[%s306 + $0x60] sm:$0xff] %vm626, %v619
        %640 = vst.msk [vmem:[%s306 + $0x68] sm:$0xff] %vm626, %v621
        %641 = vst.msk [vmem:[%s306 + $0x70] sm:$0xff] %vm626, %v623
        %642 = vst.msk [vmem:[%s306 + $0x78] sm:$0xff] %vm626, %v625
        %v643 = vld [vmem:[%s3] sm:$0x1]
        %v645 = vlaneseq
        %v646 = vshrl.u32 %v645, 7
        %v647 = vsub.s32 0, %v646
        %v648 = vrot.slane %v643, %v647
        %v650 = vmul.f32 %v413, %v648
        %v651 = vmul.f32 %v418, %v648
        %v652 = vmul.f32 %v423, %v648
        %v653 = vmul.f32 %v428, %v648
        %v654 = vmul.f32 %v433, %v648
        %v655 = vmul.f32 %v438, %v648
        %v656 = vmul.f32 %v443, %v648
        %v657 = vmul.f32 %v448, %v648
        %v658 = vmul.f32 %v453, %v648
        %v659 = vmul.f32 %v458, %v648
        %v660 = vmul.f32 %v463, %v648
        %v661 = vmul.f32 %v468, %v648
        %v662 = vmul.f32 %v473, %v648
        %v663 = vmul.f32 %v478, %v648
        %v664 = vmul.f32 %v483, %v648
        %v665 = vmul.f32 %v488, %v648
        %666 = vadd.xlane.f32.xlu0 %v650
        %v667 = vpop.xlane.xlu0 %666
        %668 = vadd.xlane.f32.xlu0 %v651
        %v669 = vpop.xlane.xlu0 %668
        %670 = vadd.xlane.f32.xlu0 %v652
        %v671 = vpop.xlane.xlu0 %670
        %672 = vadd.xlane.f32.xlu0 %v653
        %v673 = vpop.xlane.xlu0 %672
        %674 = vadd.xlane.f32.xlu0 %v654
        %v675 = vpop.xlane.xlu0 %674
        %676 = vadd.xlane.f32.xlu0 %v655
        %v677 = vpop.xlane.xlu0 %676
        %678 = vadd.xlane.f32.xlu0 %v656
        %v679 = vpop.xlane.xlu0 %678
        %680 = vadd.xlane.f32.xlu0 %v657
        %v681 = vpop.xlane.xlu0 %680
        %682 = vadd.xlane.f32.xlu0 %v658
        %v683 = vpop.xlane.xlu0 %682
        %684 = vadd.xlane.f32.xlu0 %v659
        %v685 = vpop.xlane.xlu0 %684
        %686 = vadd.xlane.f32.xlu0 %v660
        %v687 = vpop.xlane.xlu0 %686
        %688 = vadd.xlane.f32.xlu0 %v661
        %v689 = vpop.xlane.xlu0 %688
        %690 = vadd.xlane.f32.xlu0 %v662
        %v691 = vpop.xlane.xlu0 %690
        %692 = vadd.xlane.f32.xlu0 %v663
        %v693 = vpop.xlane.xlu0 %692
        %694 = vadd.xlane.f32.xlu0 %v664
        %v695 = vpop.xlane.xlu0 %694
        %696 = vadd.xlane.f32.xlu0 %v665
        %v697 = vpop.xlane.xlu0 %696
        %698 = vst.msk [vmem:[%s312] sm:$0xff] %vm626, %v667
        %699 = vst.msk [vmem:[%s312 + $0x8] sm:$0xff] %vm626, %v669
        %700 = vst.msk [vmem:[%s312 + $0x10] sm:$0xff] %vm626, %v671
        %701 = vst.msk [vmem:[%s312 + $0x18] sm:$0xff] %vm626, %v673
        %702 = vst.msk [vmem:[%s312 + $0x20] sm:$0xff] %vm626, %v675
        %703 = vst.msk [vmem:[%s312 + $0x28] sm:$0xff] %vm626, %v677
        %704 = vst.msk [vmem:[%s312 + $0x30] sm:$0xff] %vm626, %v679
        %705 = vst.msk [vmem:[%s312 + $0x38] sm:$0xff] %vm626, %v681
        %706 = vst.msk [vmem:[%s312 + $0x40] sm:$0xff] %vm626, %v683
        %707 = vst.msk [vmem:[%s312 + $0x48] sm:$0xff] %vm626, %v685
        %708 = vst.msk [vmem:[%s312 + $0x50] sm:$0xff] %vm626, %v687
        %709 = vst.msk [vmem:[%s312 + $0x58] sm:$0xff] %vm626, %v689
        %710 = vst.msk [vmem:[%s312 + $0x60] sm:$0xff] %vm626, %v691
        %711 = vst.msk [vmem:[%s312 + $0x68] sm:$0xff] %vm626, %v693
        %712 = vst.msk [vmem:[%s312 + $0x70] sm:$0xff] %vm626, %v695
        %713 = vst.msk [vmem:[%s312 + $0x78] sm:$0xff] %vm626, %v697
        %s714 = sand.u32 %s122, 1
        %s715 = scalar_lea.sflag [#allocation4], %s714
        %s716 = sand.u32 %s122, 1
        %s717 = smul.addr %s716, 64
        %s718 = scalar_lea.vmem [#allocation7], %s717
        %s719 = smul.u32 16, %s25
        %p720 = scmp.lt.s32.totalorder %s719, 31
        %s721 = scalar_select %p720, %s719, 31
        %s722 = smul.addr %s721, 8
        %s723 = scalar_lea.vmem %s5, %s722
        %s724 = smul.u32 16, %s25
        %p725 = scmp.lt.s32.totalorder %s724, 31
        %s726 = scalar_select %p725, %s724, 31
        %s727 = smul.addr %s726, 8
        %s728 = scalar_lea.vmem %s6, %s727
        // Predicated region
        $region45: #{tpu_custom_call.1} parent=35 // pred_check
          %p729 = pneg %p132
        $region46: #{tpu_custom_call.1} parent=35 // pred_check_branch
          %731 = sbr.rel (%p729) target = $region48
        $region47: #{tpu_custom_call.1} parent=35 // pred_region
          %s732 = smul.u32 16, %s25
          %s734 = ssub.s32 1024, 1024
          %735 = vsyncadd %s715, %s734
          %s736 = smul.addr %s732, 64
          %s737 = scalar_lea.hbm %s4, %s736
          %s738 = sshll.u32 %s718, 4
          %s739 = int_to_ptr.vmem [resolvable:$true] %s738
          %744 = dma.vmem_to_hbm [thread:$0]  %s739, 1024, %s737, %s715, 64, 64, 4
        $region48: #{tpu_custom_call.1} parent=35 // pred_fallthru
          _
        // Predicated region
        $region49: #{tpu_custom_call.1} parent=35 // pred_check
          %p745 = pneg %p158
        $region50: #{tpu_custom_call.1} parent=35 // pred_check_branch
          %747 = sbr.rel (%p745) target = $region52
        $region51: #{tpu_custom_call.1} parent=35 // pred_region
          %s748 = smul.u32 16, %s25
        $region52: #{tpu_custom_call.1} parent=35 // pred_fallthru
          _
        // Predicated region
        $region53: #{tpu_custom_call.1} parent=35 // pred_check
          %p749 = pneg %p184
        $region54: #{tpu_custom_call.1} parent=35 // pred_check_branch
          %751 = sbr.rel (%p749) target = $region56
        $region55: #{tpu_custom_call.1} parent=35 // pred_region
          %s752 = smul.u32 16, %s25
        $region56: #{tpu_custom_call.1} parent=35 // pred_fallthru
          _
      $region36: #{tpu_custom_call.1} parent=5 // pred_fallthru
        _
      %p753 = scmp.le.s32.totalorder 2, %s20
      // Predicated region
      $region57: #{tpu_custom_call.1} parent=5 // pred_check
        %p754 = pneg %p753
      $region58: #{tpu_custom_call.1} parent=5 // pred_check_branch
        %756 = sbr.rel (%p754) target = $region60
      $region59: #{tpu_custom_call.1} parent=5 // pred_region
        %s757 = ssub.s32 %s20, 2
        // Predicated region
        $region61: #{tpu_custom_call.1} parent=59 // pred_check
          %p758 = pneg %p138
        $region62: #{tpu_custom_call.1} parent=59 // pred_check_branch
          %760 = sbr.rel (%p758) target = $region64
        $region63: #{tpu_custom_call.1} parent=59 // pred_region
          %s761 = sand.u32 %s123, 1
          %s762 = scalar_lea.sflag [#allocation4], %s761
          %s763 = sand.u32 %s123, 1
          %s764 = smul.addr %s763, 64
          %s765 = scalar_lea.vmem [#allocation7], %s764
          %766 = dma.done %s762, 1024
        $region64: #{tpu_custom_call.1} parent=59 // pred_fallthru
          _
        // Predicated region
        $region65: #{tpu_custom_call.1} parent=59 // pred_check
          %p767 = pneg %p164
        $region66: #{tpu_custom_call.1} parent=59 // pred_check_branch
          %769 = sbr.rel (%p767) target = $region68
        $region67: #{tpu_custom_call.1} parent=59 // pred_region
          %s770 = smul.u32 16, %s26
          %p771 = scmp.lt.s32.totalorder %s770, 31
          %s772 = scalar_select %p771, %s770, 31
          %s773 = smul.addr %s772, 8
          %s774 = scalar_lea.vmem %s5, %s773
        $region68: #{tpu_custom_call.1} parent=59 // pred_fallthru
          _
        // Predicated region
        $region69: #{tpu_custom_call.1} parent=59 // pred_check
          %p775 = pneg %p190
        $region70: #{tpu_custom_call.1} parent=59 // pred_check_branch
          %777 = sbr.rel (%p775) target = $region72
        $region71: #{tpu_custom_call.1} parent=59 // pred_region
          %s778 = smul.u32 16, %s26
          %p779 = scmp.lt.s32.totalorder %s778, 31
          %s780 = scalar_select %p779, %s778, 31
          %s781 = smul.addr %s780, 8
          %s782 = scalar_lea.vmem %s6, %s781
        $region72: #{tpu_custom_call.1} parent=59 // pred_fallthru
          _
      $region60: #{tpu_custom_call.1} parent=5 // pred_fallthru
        _
    $region6: #{tpu_custom_call.1} parent=1 // loop_footer
      %s24 = sadd.s32 1, %s20
    $region7: #{tpu_custom_call.1} parent=1 // loop_footer_branch
      %19 = sbr.rel target = $region3
    $region8: #{tpu_custom_call.1} parent=1 // loop_exit
      _
    %783 = vsyncpa [#allocation3], 1
    %s784 = scalar_lea.sflag [#allocation3], 1
    %785 = vsyncpa %s784, 1
    %786 = vsyncpa [#allocation6], 1
    %787 = vsyncpa [#allocation4], 1
    %s788 = scalar_lea.sflag [#allocation4], 1
    %789 = vsyncpa %s788, 1

</llo_original>
